<compile_context>
chip_gen: v5e
topology: v5e:2x2
jax: 0.10.0
libtpu: 0.0.40
codegen_flags: <defaults>
</compile_context>

<pallas_src>
import functools

import jax
import jax.numpy as jnp
from jax.experimental import pallas as pl
from jax.experimental.pallas import tpu as pltpu


def _round_up(x, m):
    return ((x + m - 1) // m) * m


def _dueling_kernel(*refs, n_layers):
    # refs = (x, w_in, b_in, [wh_0, bh_0, ..., wh_{n-1}, bh_{n-1}], w_head, b_head, out)
    x_ref = refs[0]
    win_ref, bin_ref = refs[1], refs[2]
    hidden_refs = refs[3:3 + 2 * n_layers]
    whead_ref = refs[3 + 2 * n_layers]
    bhead_ref = refs[4 + 2 * n_layers]
    out_ref = refs[5 + 2 * n_layers]

    # Input layer: bf16 inputs on the MXU, f32 accumulation + f32 elementwise.
    h = jnp.dot(x_ref[...], win_ref[...], preferred_element_type=jnp.float32)
    h = jnp.maximum(h + bin_ref[...], 0.0)

    # Hidden layers (n_layers is a static Python int -> unrolled at trace time).
    for i in range(n_layers):
        w_ref = hidden_refs[2 * i]
        b_ref = hidden_refs[2 * i + 1]
        h = jnp.dot(h.astype(w_ref.dtype), w_ref[...],
                    preferred_element_type=jnp.float32)
        h = jnp.maximum(h + b_ref[...], 0.0)

    # Fused value+advantage head -> lane-dense (TB, 128*k) padded output block.
    y = jnp.dot(h.astype(whead_ref.dtype), whead_ref[...],
                preferred_element_type=jnp.float32)
    out_ref[...] = y + bhead_ref[...]


def dueling_dqn_forward(x, params, n_layers, *, tile_b=512):
    """x: (B, state_dim) float32. params: dict (see init_params)."""
    B, state_dim = x.shape
    H = params["win"].shape[1]
    action_dim = params["wa"].shape[1]
    head_dim = 1 + action_dim
    head_pad = _round_up(head_dim, 128)   # lane-dense output stores

    # --- Fuse V/A heads: [wv | wa] padded to 128 lanes, biases likewise. ---
    w_head = jnp.zeros((H, head_pad), jnp.float32)
    w_head = w_head.at[:, 0:1].set(params["wv"]).at[:, 1:head_dim].set(params["wa"])
    b_head = jnp.zeros((1, head_pad), jnp.float32)
    b_head = b_head.at[:, 0:1].set(params["bv"]).at[:, 1:head_dim].set(params["ba"])

    # --- bf16 on the MXU (f32 accumulation); biases stay f32. ---
    x_bf = x.astype(jnp.bfloat16)
    win_bf = params["win"].astype(jnp.bfloat16)
    wh_bf = [w.astype(jnp.bfloat16) for w in params["wh"][:n_layers]]
    w_head_bf = w_head.astype(jnp.bfloat16)

    # --- Batch tiling: pad B to a multiple of TB (TB multiple of 8, <=512). ---
    tb = min(tile_b, max(8, _round_up(B, 8)))
    b_pad = _round_up(B, tb)
    if b_pad != B:
        x_bf = jnp.pad(x_bf, ((0, b_pad - B), (0, 0)))
    grid = (b_pad // tb,)

    def resident(arr):
        # Full-array block, constant index_map -> stays resident across grid.
        nd = arr.ndim
        return pl.BlockSpec(arr.shape, lambda i, _nd=nd: (0,) * _nd)

    in_specs = [pl.BlockSpec((tb, state_dim), lambda i: (i, 0)),
                resident(win_bf), resident(params["bin"])]
    operands = [x_bf, win_bf, params["bin"]]
    for layer in range(n_layers):
        in_specs += [resident(wh_bf[layer]), resident(params["bh"][layer])]
        operands += [wh_bf[layer], params["bh"][layer]]
    in_specs += [resident(w_head_bf), resident(b_head)]
    operands += [w_head_bf, b_head]

    kernel = functools.partial(_dueling_kernel, n_layers=n_layers)
    y = pl.pallas_call(
        kernel,
        out_shape=jax.ShapeDtypeStruct((b_pad, head_pad), jnp.float32),
        grid=grid,
        in_specs=in_specs,
        out_specs=pl.BlockSpec((tb, head_pad), lambda i: (i, 0)),
        compiler_params=pltpu.CompilerParams(
            dimension_semantics=("parallel",)),
    )(*operands)

    # Finalize: torch.mean(A) is a GLOBAL scalar over all real rows/actions,
    # which couples every batch tile -> do the cheap cross-tile reduction and
    # combine here (padded rows/lanes are dropped first so they never leak in).
    y = y[:B]
    V = y[:, 0:1]
    A = y[:, 1:head_dim]
    return V + (A - jnp.mean(A))


def init_params(key, state_dim, action_dim, n_layers, hidden_size):
    """PyTorch-style uniform(+-1/sqrt(fan_in)) init.

    Weights are stored already transposed: (in_features, out_features).
    Biases have a leading broadcast dim. Hidden layers are stored as lists so
    n_layers == 0 never produces a zero-extent operand.
    """
    keys = jax.random.split(key, 6 + 2 * n_layers)

    def uni(k, shape, fan_in):
        bound = 1.0 / jnp.sqrt(jnp.float32(fan_in))
        return jax.random.uniform(k, shape, jnp.float32, -bound, bound)

    params = {
        "win": uni(keys[0], (state_dim, hidden_size), state_dim),
        "bin": uni(keys[1], (1, hidden_size), state_dim),
        "wh": [uni(keys[2 + 2 * i], (hidden_size, hidden_size), hidden_size)
               for i in range(n_layers)],
        "bh": [uni(keys[3 + 2 * i], (1, hidden_size), hidden_size)
               for i in range(n_layers)],
        "wv": uni(keys[2 + 2 * n_layers], (hidden_size, 1), hidden_size),
        "bv": uni(keys[3 + 2 * n_layers], (1, 1), hidden_size),
        "wa": uni(keys[4 + 2 * n_layers], (hidden_size, action_dim), hidden_size),
        "ba": uni(keys[5 + 2 * n_layers], (1, action_dim), hidden_size),
    }
    return params


def reference_forward(x, params, n_layers):
    """Pure-JAX reference with the same bf16-MXU / f32-elementwise precision."""
    bf = jnp.bfloat16
    h = jnp.dot(x.astype(bf), params["win"].astype(bf),
                preferred_element_type=jnp.float32)
    h = jnp.maximum(h + params["bin"], 0.0)
    for i in range(n_layers):
        h = jnp.dot(h.astype(bf), params["wh"][i].astype(bf),
                    preferred_element_type=jnp.float32)
        h = jnp.maximum(h + params["bh"][i], 0.0)
    hb = h.astype(bf)
    V = jnp.dot(hb, params["wv"].astype(bf),
                preferred_element_type=jnp.float32) + params["bv"]
    A = jnp.dot(hb, params["wa"].astype(bf),
                preferred_element_type=jnp.float32) + params["ba"]
    return V + (A - jnp.mean(A))


if __name__ == "__main__":
    # Small, deterministic configuration consistent with the module.
    batch, state_dim, action_dim = 2, 16, 8
    n_layers, hidden_size = 2, 32

    key = jax.random.PRNGKey(0)
    kx, kp = jax.random.split(key)
    x = jax.random.normal(kx, (batch, state_dim), jnp.float32)
    params = init_params(kp, state_dim, action_dim, n_layers, hidden_size)

    out = dueling_dqn_forward(x, params, n_layers)
    out = jax.block_until_ready(out)

    ref = reference_forward(x, params, n_layers)
    assert out.shape == (batch, action_dim), out.shape
    assert jnp.allclose(out, ref, atol=1e-3, rtol=1e-3), (
        f"max abs err = {jnp.max(jnp.abs(out - ref))}")

    print("KERNEL_OK")
</pallas_src>

<mosaic_0001>
module attributes {stable_mosaic.version = 11 : i64} {
  func.func @_dueling_kernel(%arg0: i32, %arg1: memref<8x16xbf16, #tpu.memory_space<vmem>>, %arg2: memref<16x32xbf16, #tpu.memory_space<vmem>>, %arg3: memref<1x32xf32, #tpu.memory_space<vmem>>, %arg4: memref<32x32xbf16, #tpu.memory_space<vmem>>, %arg5: memref<1x32xf32, #tpu.memory_space<vmem>>, %arg6: memref<32x32xbf16, #tpu.memory_space<vmem>>, %arg7: memref<1x32xf32, #tpu.memory_space<vmem>>, %arg8: memref<32x128xbf16, #tpu.memory_space<vmem>>, %arg9: memref<1x128xf32, #tpu.memory_space<vmem>>, %arg10: memref<8x128xf32, #tpu.memory_space<vmem>>) attributes {dimension_semantics = [#tpu.dimension_semantics<parallel>], iteration_bounds = array<i64: 1>, scalar_prefetch = 0 : i64, scratch_operands = 0 : i64, tpu.core_type = #tpu.core_type<tc>, window_params = [{transform_indices = @transform_0, window_bounds = array<i64: 8, 16>}, {pipeline_mode = #tpu.pipeline_mode<synchronous>, transform_indices = @transform_1, window_bounds = array<i64: 16, 32>}, {pipeline_mode = #tpu.pipeline_mode<synchronous>, transform_indices = @transform_2, window_bounds = array<i64: 1, 32>}, {pipeline_mode = #tpu.pipeline_mode<synchronous>, transform_indices = @transform_3, window_bounds = array<i64: 32, 32>}, {pipeline_mode = #tpu.pipeline_mode<synchronous>, transform_indices = @transform_4, window_bounds = array<i64: 1, 32>}, {pipeline_mode = #tpu.pipeline_mode<synchronous>, transform_indices = @transform_5, window_bounds = array<i64: 32, 32>}, {pipeline_mode = #tpu.pipeline_mode<synchronous>, transform_indices = @transform_6, window_bounds = array<i64: 1, 32>}, {pipeline_mode = #tpu.pipeline_mode<synchronous>, transform_indices = @transform_7, window_bounds = array<i64: 32, 128>}, {pipeline_mode = #tpu.pipeline_mode<synchronous>, transform_indices = @transform_8, window_bounds = array<i64: 1, 128>}, {transform_indices = @transform_9, window_bounds = array<i64: 8, 128>}]} {
    %c0 = arith.constant 0 : index
    %c0_0 = arith.constant 0 : index
    %0 = vector.load %arg1[%c0, %c0_0] : memref<8x16xbf16, #tpu.memory_space<vmem>>, vector<8x16xbf16>
    %c0_1 = arith.constant 0 : index
    %c0_2 = arith.constant 0 : index
    %1 = vector.load %arg2[%c0_1, %c0_2] : memref<16x32xbf16, #tpu.memory_space<vmem>>, vector<16x32xbf16>
    %cst = arith.constant dense<0.000000e+00> : vector<8x32xf32>
    %2 = tpu.matmul %0, %1, %cst {dimension_numbers = #tpu.dot_dimension_numbers<[1], [0], [0], [1], [0, 0, 1, 1], [], []>} : vector<8x16xbf16>, vector<16x32xbf16>, vector<8x32xf32> -> vector<8x32xf32>
    %c0_3 = arith.constant 0 : index
    %c0_4 = arith.constant 0 : index
    %3 = vector.load %arg3[%c0_3, %c0_4] : memref<1x32xf32, #tpu.memory_space<vmem>>, vector<1x32xf32>
    %4 = vector.broadcast %3 : vector<1x32xf32> to vector<8x32xf32>
    %5 = arith.addf %2, %4 : vector<8x32xf32>
    %cst_5 = arith.constant 0.000000e+00 : f32
    %6 = vector.broadcast %cst_5 : f32 to vector<8x32xf32>
    %7 = arith.maximumf %5, %6 : vector<8x32xf32>
    %8 = arith.truncf %7 : vector<8x32xf32> to vector<8x32xbf16>
    %c0_6 = arith.constant 0 : index
    %c0_7 = arith.constant 0 : index
    %9 = vector.load %arg4[%c0_6, %c0_7] : memref<32x32xbf16, #tpu.memory_space<vmem>>, vector<32x32xbf16>
    %cst_8 = arith.constant dense<0.000000e+00> : vector<8x32xf32>
    %10 = tpu.matmul %8, %9, %cst_8 {dimension_numbers = #tpu.dot_dimension_numbers<[1], [0], [0], [1], [0, 0, 1, 1], [], []>} : vector<8x32xbf16>, vector<32x32xbf16>, vector<8x32xf32> -> vector<8x32xf32>
    %c0_9 = arith.constant 0 : index
    %c0_10 = arith.constant 0 : index
    %11 = vector.load %arg5[%c0_9, %c0_10] : memref<1x32xf32, #tpu.memory_space<vmem>>, vector<1x32xf32>
    %12 = vector.broadcast %11 : vector<1x32xf32> to vector<8x32xf32>
    %13 = arith.addf %10, %12 : vector<8x32xf32>
    %cst_11 = arith.constant 0.000000e+00 : f32
    %14 = vector.broadcast %cst_11 : f32 to vector<8x32xf32>
    %15 = arith.maximumf %13, %14 : vector<8x32xf32>
    %16 = arith.truncf %15 : vector<8x32xf32> to vector<8x32xbf16>
    %c0_12 = arith.constant 0 : index
    %c0_13 = arith.constant 0 : index
    %17 = vector.load %arg6[%c0_12, %c0_13] : memref<32x32xbf16, #tpu.memory_space<vmem>>, vector<32x32xbf16>
    %cst_14 = arith.constant dense<0.000000e+00> : vector<8x32xf32>
    %18 = tpu.matmul %16, %17, %cst_14 {dimension_numbers = #tpu.dot_dimension_numbers<[1], [0], [0], [1], [0, 0, 1, 1], [], []>} : vector<8x32xbf16>, vector<32x32xbf16>, vector<8x32xf32> -> vector<8x32xf32>
    %c0_15 = arith.constant 0 : index
    %c0_16 = arith.constant 0 : index
    %19 = vector.load %arg7[%c0_15, %c0_16] : memref<1x32xf32, #tpu.memory_space<vmem>>, vector<1x32xf32>
    %20 = vector.broadcast %19 : vector<1x32xf32> to vector<8x32xf32>
    %21 = arith.addf %18, %20 : vector<8x32xf32>
    %cst_17 = arith.constant 0.000000e+00 : f32
    %22 = vector.broadcast %cst_17 : f32 to vector<8x32xf32>
    %23 = arith.maximumf %21, %22 : vector<8x32xf32>
    %24 = arith.truncf %23 : vector<8x32xf32> to vector<8x32xbf16>
    %c0_18 = arith.constant 0 : index
    %c0_19 = arith.constant 0 : index
    %25 = vector.load %arg8[%c0_18, %c0_19] : memref<32x128xbf16, #tpu.memory_space<vmem>>, vector<32x128xbf16>
    %cst_20 = arith.constant dense<0.000000e+00> : vector<8x128xf32>
    %26 = tpu.matmul %24, %25, %cst_20 {dimension_numbers = #tpu.dot_dimension_numbers<[1], [0], [0], [1], [0, 0, 1, 1], [], []>} : vector<8x32xbf16>, vector<32x128xbf16>, vector<8x128xf32> -> vector<8x128xf32>
    %c0_21 = arith.constant 0 : index
    %c0_22 = arith.constant 0 : index
    %27 = vector.load %arg9[%c0_21, %c0_22] : memref<1x128xf32, #tpu.memory_space<vmem>>, vector<1x128xf32>
    %28 = vector.broadcast %27 : vector<1x128xf32> to vector<8x128xf32>
    %29 = arith.addf %26, %28 : vector<8x128xf32>
    %c0_23 = arith.constant 0 : index
    %c0_24 = arith.constant 0 : index
    %30 = vector.load %arg10[%c0_23, %c0_24] : memref<8x128xf32, #tpu.memory_space<vmem>>, vector<8x128xf32>
    tpu.vector_store %arg10[%c0_23, %c0_24], %29 {strides = array<i32>} : memref<8x128xf32, #tpu.memory_space<vmem>>, vector<8x128xf32>,
    return
  }
  func.func @transform_0(%arg0: i32) -> (i32, i32) {
    %c0_i32 = arith.constant 0 : i32
    %c0_i32_0 = arith.constant 0 : i32
    return %arg0, %c0_i32 : i32, i32
  }
  func.func @transform_1(%arg0: i32) -> (i32, i32) {
    %c0_i32 = arith.constant 0 : i32
    %c0_i32_0 = arith.constant 0 : i32
    %c0_i32_1 = arith.constant 0 : i32
    return %c0_i32, %c0_i32_0 : i32, i32
  }
  func.func @transform_2(%arg0: i32) -> (i32, i32) {
    %c0_i32 = arith.constant 0 : i32
    %c0_i32_0 = arith.constant 0 : i32
    %c0_i32_1 = arith.constant 0 : i32
    return %c0_i32, %c0_i32_0 : i32, i32
  }
  func.func @transform_3(%arg0: i32) -> (i32, i32) {
    %c0_i32 = arith.constant 0 : i32
    %c0_i32_0 = arith.constant 0 : i32
    %c0_i32_1 = arith.constant 0 : i32
    return %c0_i32, %c0_i32_0 : i32, i32
  }
  func.func @transform_4(%arg0: i32) -> (i32, i32) {
    %c0_i32 = arith.constant 0 : i32
    %c0_i32_0 = arith.constant 0 : i32
    %c0_i32_1 = arith.constant 0 : i32
    return %c0_i32, %c0_i32_0 : i32, i32
  }
  func.func @transform_5(%arg0: i32) -> (i32, i32) {
    %c0_i32 = arith.constant 0 : i32
    %c0_i32_0 = arith.constant 0 : i32
    %c0_i32_1 = arith.constant 0 : i32
    return %c0_i32, %c0_i32_0 : i32, i32
  }
  func.func @transform_6(%arg0: i32) -> (i32, i32) {
    %c0_i32 = arith.constant 0 : i32
    %c0_i32_0 = arith.constant 0 : i32
    %c0_i32_1 = arith.constant 0 : i32
    return %c0_i32, %c0_i32_0 : i32, i32
  }
  func.func @transform_7(%arg0: i32) -> (i32, i32) {
    %c0_i32 = arith.constant 0 : i32
    %c0_i32_0 = arith.constant 0 : i32
    %c0_i32_1 = arith.constant 0 : i32
    return %c0_i32, %c0_i32_0 : i32, i32
  }
  func.func @transform_8(%arg0: i32) -> (i32, i32) {
    %c0_i32 = arith.constant 0 : i32
    %c0_i32_0 = arith.constant 0 : i32
    %c0_i32_1 = arith.constant 0 : i32
    return %c0_i32, %c0_i32_0 : i32, i32
  }
  func.func @transform_9(%arg0: i32) -> (i32, i32) {
    %c0_i32 = arith.constant 0 : i32
    %c0_i32_0 = arith.constant 0 : i32
    return %arg0, %c0_i32 : i32, i32
  }
}

</mosaic_0001>

<llo_original>
// kernel: tpu_custom_call.1
$region0: #{tpu_custom_call.1}
  #allocation0 [shape = 'u32[]', space=smem, size = 0x4, offset = 0x4, fixed_abs, tag = 'smem constant byte address 0x4 - core index']
  #allocation1 [shape = 'u32[72,128]{1,0:T(1,128)}', space=vmem, size = 0x9000, scoped, tag = 'internal scratch']
  %s0 = inlined_call_operand.hbm [shape: bf16[8,16], index: 0, kind: input, shape index: {}]
  %s1 = inlined_call_operand.hbm [shape: bf16[16,32], index: 1, kind: input, shape index: {}]
  %s2 = inlined_call_operand.vmem [shape: f32[1,32], index: 2, kind: input, shape index: {}]
  %s3 = inlined_call_operand.hbm [shape: bf16[32,32], index: 3, kind: input, shape index: {}]
  %s4 = inlined_call_operand.vmem [shape: f32[1,32], index: 4, kind: input, shape index: {}]
  %s5 = inlined_call_operand.hbm [shape: bf16[32,32], index: 5, kind: input, shape index: {}]
  %s6 = inlined_call_operand.vmem [shape: f32[1,32], index: 6, kind: input, shape index: {}]
  %s7 = inlined_call_operand.hbm [shape: bf16[32,128], index: 7, kind: input, shape index: {}]
  %s8 = inlined_call_operand.vmem [shape: f32[1,128], index: 8, kind: input, shape index: {}]
  %s9 = inlined_call_operand.hbm [shape: f32[8,128], index: 9, kind: output, shape index: {}]
  %s10 = sld [smem:[#allocation0]]
  $region66: #{tpu_custom_call.1} parent=0
    _
  %s12 = ssub.s32 1, %s10
  %s13 = scalar_select 0, %s12, %s10
  $region1: #{tpu_custom_call.1} parent=0
    #allocation2 [shape = 'u8[2048]{0}', space=vmem, size = 0x800, scoped, tag = 'input window, operand 0, single buffered']
    #allocation3 [shape = 's32[1]{0}', space=sflag, size = 0x4, scoped, tag = 'scoped memory for tpu_custom_call.1']
    #allocation4 [shape = 's32[1]{0}', space=sflag, size = 0x4, scoped, tag = 'scoped memory for tpu_custom_call.1']
    #allocation5 [shape = 'u8[4096]{0}', space=vmem, size = 0x1000, scoped, tag = 'input window, operand 1, single buffered']
    #allocation6 [shape = 's32[1]{0}', space=sflag, size = 0x4, scoped, tag = 'scoped memory for tpu_custom_call.1']
    #allocation7 [shape = 'u8[8192]{0}', space=vmem, size = 0x2000, scoped, tag = 'input window, operand 3, single buffered']
    #allocation8 [shape = 'u8[8192]{0}', space=vmem, size = 0x2000, scoped, tag = 'input window, operand 5, single buffered']
    #allocation9 [shape = 's32[1]{0}', space=sflag, size = 0x4, scoped, tag = 'scoped memory for tpu_custom_call.1']
    #allocation10 [shape = 'u8[8192]{0}', space=vmem, size = 0x2000, scoped, tag = 'input window, operand 7, single buffered']
    #allocation11 [shape = 'u8[4096]{0}', space=vmem, size = 0x1000, scoped, tag = 'output window, operand 0, single buffered']
    %14 = vsyncpa [#allocation3], 0
    %15 = vsyncpa [#allocation6], 0
    %16 = vsyncpa [#allocation9], 0
    %17 = vsyncpa [#allocation4], 0
    // Predicated region
    $region2: #{tpu_custom_call.1} parent=1 // pred_check
      _
    $region3: #{tpu_custom_call.1} parent=1 // pred_check_branch
      %19 = sbr.rel (0) target = $region5
    $region4: #{tpu_custom_call.1} parent=1 // pred_region
      %21 = vsyncadd [#allocation3], 0
      %s23 = sshll.u32 %s0, 4
      %s24 = int_to_ptr.hbm [resolvable:$true] %s23
      %s25 = sshll.u32 [#allocation2], 4
      %s26 = int_to_ptr.vmem [resolvable:$true] %s25
      %28 = dma.hbm_to_vmem [thread:$0]  %s24, 64, %s26, [#allocation3]
    $region5: #{tpu_custom_call.1} parent=1 // pred_fallthru
      _
    // Predicated region
    $region6: #{tpu_custom_call.1} parent=1 // pred_check
      _
    $region7: #{tpu_custom_call.1} parent=1 // pred_check_branch
      %30 = sbr.rel (0) target = $region9
    $region8: #{tpu_custom_call.1} parent=1 // pred_region
      %32 = vsyncadd [#allocation6], 0
      %s33 = sshll.u32 %s1, 4
      %s34 = int_to_ptr.hbm [resolvable:$true] %s33
      %s35 = sshll.u32 [#allocation5], 4
      %s36 = int_to_ptr.vmem [resolvable:$true] %s35
      %41 = dma.hbm_to_vmem [thread:$0]  %s34, 128, %s36, [#allocation6], 64, 64, 4
    $region9: #{tpu_custom_call.1} parent=1 // pred_fallthru
      _
    // Predicated region
    $region10: #{tpu_custom_call.1} parent=1 // pred_check
      _
    $region11: #{tpu_custom_call.1} parent=1 // pred_check_branch
      %43 = sbr.rel (0) target = $region13
    $region12: #{tpu_custom_call.1} parent=1 // pred_region
      _
    $region13: #{tpu_custom_call.1} parent=1 // pred_fallthru
      _
    // Predicated region
    $region14: #{tpu_custom_call.1} parent=1 // pred_check
      _
    $region15: #{tpu_custom_call.1} parent=1 // pred_check_branch
      %45 = sbr.rel (0) target = $region17
    $region16: #{tpu_custom_call.1} parent=1 // pred_region
      %47 = vsyncadd [#allocation6], 0
      %s48 = sshll.u32 %s3, 4
      %s49 = int_to_ptr.hbm [resolvable:$true] %s48
      %s50 = sshll.u32 [#allocation7], 4
      %s51 = int_to_ptr.vmem [resolvable:$true] %s50
      %56 = dma.hbm_to_vmem [thread:$0]  %s49, 256, %s51, [#allocation6], 64, 64, 4
    $region17: #{tpu_custom_call.1} parent=1 // pred_fallthru
      _
    // Predicated region
    $region18: #{tpu_custom_call.1} parent=1 // pred_check
      _
    $region19: #{tpu_custom_call.1} parent=1 // pred_check_branch
      %58 = sbr.rel (0) target = $region21
    $region20: #{tpu_custom_call.1} parent=1 // pred_region
      _
    $region21: #{tpu_custom_call.1} parent=1 // pred_fallthru
      _
    // Predicated region
    $region22: #{tpu_custom_call.1} parent=1 // pred_check
      _
    $region23: #{tpu_custom_call.1} parent=1 // pred_check_branch
      %60 = sbr.rel (0) target = $region25
    $region24: #{tpu_custom_call.1} parent=1 // pred_region
      %62 = vsyncadd [#allocation9], 0
      %s63 = sshll.u32 %s5, 4
      %s64 = int_to_ptr.hbm [resolvable:$true] %s63
      %s65 = sshll.u32 [#allocation8], 4
      %s66 = int_to_ptr.vmem [resolvable:$true] %s65
      %71 = dma.hbm_to_vmem [thread:$0]  %s64, 256, %s66, [#allocation9], 64, 64, 4
    $region25: #{tpu_custom_call.1} parent=1 // pred_fallthru
      _
    // Predicated region
    $region26: #{tpu_custom_call.1} parent=1 // pred_check
      _
    $region27: #{tpu_custom_call.1} parent=1 // pred_check_branch
      %73 = sbr.rel (0) target = $region29
    $region28: #{tpu_custom_call.1} parent=1 // pred_region
      _
    $region29: #{tpu_custom_call.1} parent=1 // pred_fallthru
      _
    // Predicated region
    $region30: #{tpu_custom_call.1} parent=1 // pred_check
      _
    $region31: #{tpu_custom_call.1} parent=1 // pred_check_branch
      %75 = sbr.rel (0) target = $region33
    $region32: #{tpu_custom_call.1} parent=1 // pred_region
      %77 = vsyncadd [#allocation9], 0
      %s78 = sshll.u32 %s7, 4
      %s79 = int_to_ptr.hbm [resolvable:$true] %s78
      %s80 = sshll.u32 [#allocation10], 4
      %s81 = int_to_ptr.vmem [resolvable:$true] %s80
      %86 = dma.hbm_to_vmem [thread:$0]  %s79, 256, %s81, [#allocation9], 64, 64, 4
    $region33: #{tpu_custom_call.1} parent=1 // pred_fallthru
      _
    // Predicated region
    $region34: #{tpu_custom_call.1} parent=1 // pred_check
      _
    $region35: #{tpu_custom_call.1} parent=1 // pred_check_branch
      %88 = sbr.rel (0) target = $region37
    $region36: #{tpu_custom_call.1} parent=1 // pred_region
      _
    $region37: #{tpu_custom_call.1} parent=1 // pred_fallthru
      _
    // Predicated region
    $region38: #{tpu_custom_call.1} parent=1 // pred_check
      _
    $region39: #{tpu_custom_call.1} parent=1 // pred_check_branch
      %90 = sbr.rel (0) target = $region41
    $region40: #{tpu_custom_call.1} parent=1 // pred_region
      %92 = dma.done [#allocation3], 64
    $region41: #{tpu_custom_call.1} parent=1 // pred_fallthru
      _
    // Predicated region
    $region42: #{tpu_custom_call.1} parent=1 // pred_check
      _
    $region43: #{tpu_custom_call.1} parent=1 // pred_check_branch
      %94 = sbr.rel (0) target = $region45
    $region44: #{tpu_custom_call.1} parent=1 // pred_region
      %96 = dma.done [#allocation6], 128
    $region45: #{tpu_custom_call.1} parent=1 // pred_fallthru
      _
    // Predicated region
    $region46: #{tpu_custom_call.1} parent=1 // pred_check
      _
    $region47: #{tpu_custom_call.1} parent=1 // pred_check_branch
      %98 = sbr.rel (0) target = $region49
    $region48: #{tpu_custom_call.1} parent=1 // pred_region
      %100 = dma.done [#allocation6], 256
    $region49: #{tpu_custom_call.1} parent=1 // pred_fallthru
      _
    // Predicated region
    $region50: #{tpu_custom_call.1} parent=1 // pred_check
      _
    $region51: #{tpu_custom_call.1} parent=1 // pred_check_branch
      %102 = sbr.rel (0) target = $region53
    $region52: #{tpu_custom_call.1} parent=1 // pred_region
      %104 = dma.done [#allocation9], 256
    $region53: #{tpu_custom_call.1} parent=1 // pred_fallthru
      _
    // Predicated region
    $region54: #{tpu_custom_call.1} parent=1 // pred_check
      _
    $region55: #{tpu_custom_call.1} parent=1 // pred_check_branch
      %106 = sbr.rel (0) target = $region57
    $region56: #{tpu_custom_call.1} parent=1 // pred_region
      %108 = dma.done [#allocation9], 256
    $region57: #{tpu_custom_call.1} parent=1 // pred_fallthru
      _
    %v110 = vld [vmem:[#allocation2] sm:$0xf]
    %v111 = vld [vmem:[#allocation5] sm:$0xf]
    %v112 = vld [vmem:[#allocation5 + $0x4] sm:$0xf]
    %v113 = vld [vmem:[%s2] sm:$0x1]
    %v115 = vperm.slane %v113, 0
    %v119 = vunpack.c.l.b16 %v111
    %v120 = vunpack.c.l.b16 %v112
    %v121 = vpack.c.b16 %v120, %v119
    %vm123 = vcmask 130048
    %v125 = vsel %vm123, %v110, 0
    %127 = vmatpush.bf16.msra.mxu0 0
    %128 = vmatpush.bf16.msra.mxu0 0
    %129 = vmatpush.bf16.msra.mxu0 0
    %130 = vmatpush.bf16.msra.mxu0 0
    %131 = vmatpush.bf16.msra.mxu0 0
    %132 = vmatpush.bf16.msra.mxu0 0
    %133 = vmatpush.bf16.msra.mxu0 0
    %134 = vmatpush.bf16.msra.mxu0 %v121
    %135 = vmatmul.bf16.gmra.mxu0 %v125
    %v136 = vpop.f32.mrf.mxu0
    %v137 = vadd.f32 %v115, %v136
    %v138 = vpop.f32.mrf.mxu0
    %139 = vdwg.mxu0
    %v140 = vmax.f32 %v137, 0.0
    %v141 = vpack.c.bf16 %v140, %v140
    %v142 = vld [vmem:[#allocation7] sm:$0xf]
    %v143 = vld [vmem:[#allocation7 + $0x4] sm:$0xf]
    %v144 = vld [vmem:[#allocation7 + $0x8] sm:$0xf]
    %v145 = vld [vmem:[#allocation7 + $0xc] sm:$0xf]
    %v146 = vld [vmem:[%s4] sm:$0x1]
    %v148 = vperm.slane %v146, 0
    %v154 = vunpack.c.l.b16 %v142
    %v155 = vunpack.c.l.b16 %v143
    %v156 = vunpack.c.l.b16 %v144
    %v157 = vunpack.c.l.b16 %v145
    %v158 = vpack.c.b16 %v155, %v154
    %v159 = vpack.c.b16 %v157, %v156
    %vm162 = vcmask 261120
    %v164 = vsel %vm162, %v141, 0
    %166 = vmatpush.bf16.msra.mxu0 0
    %167 = vmatpush.bf16.msra.mxu0 0
    %168 = vmatpush.bf16.msra.mxu0 0
    %169 = vmatpush.bf16.msra.mxu0 0
    %170 = vmatpush.bf16.msra.mxu0 0
    %171 = vmatpush.bf16.msra.mxu0 0
    %172 = vmatpush.bf16.msra.mxu0 %v159
    %173 = vmatpush.bf16.msra.mxu0 %v158
    %174 = vmatmul.bf16.gmra.mxu0 %v164
    %v175 = vpop.f32.mrf.mxu0
    %v176 = vadd.f32 %v148, %v175
    %v177 = vpop.f32.mrf.mxu0
    %178 = vdwg.mxu0
    %v179 = vmax.f32 %v176, 0.0
    %v180 = vpack.c.bf16 %v179, %v179
    %v181 = vld [vmem:[#allocation8] sm:$0xf]
    %v182 = vld [vmem:[#allocation8 + $0x4] sm:$0xf]
    %v183 = vld [vmem:[#allocation8 + $0x8] sm:$0xf]
    %v184 = vld [vmem:[#allocation8 + $0xc] sm:$0xf]
    %v185 = vld [vmem:[%s6] sm:$0x1]
    %v187 = vperm.slane %v185, 0
    %v193 = vunpack.c.l.b16 %v181
    %v194 = vunpack.c.l.b16 %v182
    %v195 = vunpack.c.l.b16 %v183
    %v196 = vunpack.c.l.b16 %v184
    %v197 = vpack.c.b16 %v194, %v193
    %v198 = vpack.c.b16 %v196, %v195
    %v202 = vsel %vm162, %v180, 0
    %204 = vmatpush.bf16.msra.mxu0 0
    %205 = vmatpush.bf16.msra.mxu0 0
    %206 = vmatpush.bf16.msra.mxu0 0
    %207 = vmatpush.bf16.msra.mxu0 0
    %208 = vmatpush.bf16.msra.mxu0 0
    %209 = vmatpush.bf16.msra.mxu0 0
    %210 = vmatpush.bf16.msra.mxu0 %v198
    %211 = vmatpush.bf16.msra.mxu0 %v197
    %212 = vmatmul.bf16.gmra.mxu0 %v202
    %v213 = vpop.f32.mrf.mxu0
    %v214 = vadd.f32 %v187, %v213
    %v215 = vpop.f32.mrf.mxu0
    %216 = vdwg.mxu0
    %v217 = vmax.f32 %v214, 0.0
    %v218 = vpack.c.bf16 %v217, %v217
    %v219 = vld [vmem:[#allocation10] sm:$0xf]
    %v220 = vld [vmem:[#allocation10 + $0x4] sm:$0xf]
    %v221 = vld [vmem:[#allocation10 + $0x8] sm:$0xf]
    %v222 = vld [vmem:[#allocation10 + $0xc] sm:$0xf]
    %v223 = vld [vmem:[%s8] sm:$0x1]
    %v225 = vperm.slane %v223, 0
    %v231 = vunpack.c.l.b16 %v219
    %v232 = vunpack.c.l.b16 %v220
    %v233 = vunpack.c.l.b16 %v221
    %v234 = vunpack.c.l.b16 %v222
    %v235 = vpack.c.b16 %v232, %v231
    %v236 = vpack.c.b16 %v234, %v233
    %v240 = vsel %vm162, %v218, 0
    %242 = vmatpush.bf16.msra.mxu0 0
    %243 = vmatpush.bf16.msra.mxu0 0
    %244 = vmatpush.bf16.msra.mxu0 0
    %245 = vmatpush.bf16.msra.mxu0 0
    %246 = vmatpush.bf16.msra.mxu0 0
    %247 = vmatpush.bf16.msra.mxu0 0
    %248 = vmatpush.bf16.msra.mxu0 %v236
    %249 = vmatpush.bf16.msra.mxu0 %v235
    %250 = vmatmul.bf16.gmra.mxu0 %v240
    %v251 = vpop.f32.mrf.mxu0
    %v252 = vadd.f32 %v225, %v251
    %v253 = vpop.f32.mrf.mxu0
    %254 = vdwg.mxu0
    %255 = vst [vmem:[#allocation11] sm:$0xff] %v252
    // Predicated region
    $region58: #{tpu_custom_call.1} parent=1 // pred_check
      _
    $region59: #{tpu_custom_call.1} parent=1 // pred_check_branch
      %257 = sbr.rel (0) target = $region61
    $region60: #{tpu_custom_call.1} parent=1 // pred_region
      %259 = vsyncadd [#allocation4], 0
      %s261 = sshll.u32 [#allocation11], 4
      %s262 = int_to_ptr.vmem [resolvable:$true] %s261
      %s263 = sshll.u32 %s9, 4
      %s264 = int_to_ptr.hbm [resolvable:$true] %s263
      %266 = dma.vmem_to_hbm [thread:$0]  %s262, 128, %s264, [#allocation4]
    $region61: #{tpu_custom_call.1} parent=1 // pred_fallthru
      _
    // Predicated region
    $region62: #{tpu_custom_call.1} parent=1 // pred_check
      _
    $region63: #{tpu_custom_call.1} parent=1 // pred_check_branch
      %268 = sbr.rel (0) target = $region65
    $region64: #{tpu_custom_call.1} parent=1 // pred_region
      %270 = dma.done [#allocation4], 128
    $region65: #{tpu_custom_call.1} parent=1 // pred_fallthru
      _
    %271 = vsyncpa [#allocation3], 1
    %272 = vsyncpa [#allocation6], 1
    %273 = vsyncpa [#allocation9], 1
    %274 = vsyncpa [#allocation4], 1

</llo_original>
